<compile_context>
chip_gen: v6e
topology: v6e:2x2x1
jax: 0.10.0
libtpu: 0.0.40
codegen_flags: <defaults>
</compile_context>

<pallas_src>
import functools

import jax
import jax.numpy as jnp
from jax.experimental import pallas as pl
from jax.experimental.pallas import tpu as pltpu


def _make_kernel(m_total: int):
    inv_m = 1.0 / float(m_total)  # hoisted constant: mean == sum * (1/M)

    def kernel(x_ref, y_ref, o_ref, acc_ref):
        m_idx = pl.program_id(0)

        @pl.when(m_idx == 0)
        def _init():
            acc_ref[...] = jnp.zeros_like(acc_ref)

        x = x_ref[...]                       # (N, D)      native dtype (MXU input)
        y = y_ref[...]                       # (TILE_M, D) native dtype (MXU input)

        # Row norms accumulated in f32 (cheap: O(N*D) + O(TILE_M*D)).
        xf = x.astype(jnp.float32)
        yf = y.astype(jnp.float32)
        x_sq = jnp.sum(xf * xf, axis=-1, keepdims=True)       # (N, 1)
        y_sq = jnp.sum(yf * yf, axis=-1, keepdims=True)       # (TILE_M, 1)

        # Gram term on the MXU, f32 accumulation.
        xy = jnp.dot(x, y.T, preferred_element_type=jnp.float32)   # (N, TILE_M)

        d2 = x_sq + jnp.transpose(y_sq) - 2.0 * xy
        # Clamp: cancellation in the Gram form can push d2 slightly negative.
        dists = jnp.sqrt(jnp.maximum(d2, 0.0) + 1e-12)              # (N, TILE_M)

        acc_ref[...] += jnp.sum(dists, axis=-1, keepdims=True)      # (N, 1)

        @pl.when(m_idx == pl.num_programs(0) - 1)
        def _finalize():
            d = acc_ref[...] * inv_m                     # (N, 1) per-row mean dist
            dd = d - jnp.transpose(d)                    # (N, N)
            o_ref[...] = jnp.sum(jnp.sqrt(dd * dd + 1e-12), keepdims=True)

    return kernel


def _pick_tile_m(m: int) -> int:
    # Lane-friendly 128-multiple tile that divides M; fall back to whole M
    # (whole-array block is always legal w.r.t. the (8,128) rule).
    for t in (512, 256, 128):
        if m % t == 0:
            return t
    return m


@functools.partial(jax.jit, static_argnames=("tile_m",))
def dist_regularize_loss(ide_feats, u_feats, *, tile_m: int | None = None):
    n, d_feat = ide_feats.shape
    m, d_feat2 = u_feats.shape
    assert d_feat == d_feat2, "feature dims must match"

    if tile_m is None:
        tile_m = _pick_tile_m(m)
    assert m % tile_m == 0, "tile_m must divide M"
    grid = (m // tile_m,)

    itemsize = jnp.dtype(ide_feats.dtype).itemsize
    cost = pl.CostEstimate(
        flops=2 * n * m * d_feat + 6 * n * m + 4 * n * n,
        transcendentals=n * m + n * n,                 # the sqrts
        bytes_accessed=(n + m) * d_feat * itemsize + 4,
    )

    out = pl.pallas_call(
        _make_kernel(m),
        out_shape=jax.ShapeDtypeStruct((1, 1), jnp.float32),
        grid_spec=pltpu.PrefetchScalarGridSpec(
            num_scalar_prefetch=0,
            grid=grid,
            in_specs=[
                # ide_feats resident across the whole M reduction.
                pl.BlockSpec((n, d_feat), lambda mi: (0, 0)),
                # u_feats streamed in TILE_M-row slabs (double-buffered DMA).
                pl.BlockSpec((tile_m, d_feat), lambda mi: (mi, 0)),
            ],
            out_specs=pl.BlockSpec((1, 1), lambda mi: (0, 0)),
            scratch_shapes=[pltpu.VMEM((n, 1), jnp.float32)],   # per-row dist sums
        ),
        compiler_params=pltpu.CompilerParams(
            dimension_semantics=("arbitrary",),        # M axis is a reduction
            vmem_limit_bytes=32 * 1024 * 1024,         # safe on v5e/v6e/v7x
        ),
        cost_estimate=cost,
    )(ide_feats, u_feats)
    return out[0, 0]


def _reference(ide_feats, u_feats):
    # Direct (PyTorch-equivalent) formulation.
    x = ide_feats[:, None, :].astype(jnp.float32)
    y = u_feats[None, :, :].astype(jnp.float32)
    dists = jnp.sqrt(jnp.sum((x - y) ** 2, axis=-1) + 1e-12)
    d = jnp.mean(dists, axis=-1)
    dd = d[:, None] - d[None, :]
    return jnp.sum(jnp.sqrt(dd ** 2 + 1e-12))


if __name__ == "__main__":
    key = jax.random.PRNGKey(0)
    k1, k2 = jax.random.split(key)
    # ide_feats: (N, D), u_feats: (M, D). M chosen as a 128-multiple so the
    # tiled / pipelined path (grid over M) is exercised.
    N, M, D = 8, 256, 32
    ide_feats = jax.random.normal(k1, (N, D), dtype=jnp.float32)
    u_feats = jax.random.normal(k2, (M, D), dtype=jnp.float32)

    # tile_m=128 -> grid=(2,): exercises the pl.when init/accumulate/finalize path.
    loss = dist_regularize_loss(ide_feats, u_feats, tile_m=128)
    jax.block_until_ready(loss)

    ref = _reference(ide_feats, u_feats)
    assert jnp.isfinite(loss), loss
    # Gram-matrix form differs from the direct form only by f32 rounding.
    assert jnp.allclose(loss, ref, rtol=5e-4, atol=1e-5), (loss, ref)
    print("KERNEL_OK")
</pallas_src>

<mosaic_0001>
module attributes {stable_mosaic.version = 11 : i64} {
  func.func @kernel(%arg0: i32, %arg1: memref<8x32xf32, #tpu.memory_space<vmem>>, %arg2: memref<128x32xf32, #tpu.memory_space<vmem>>, %arg3: memref<1x1xf32, #tpu.memory_space<vmem>>, %arg4: memref<8x1xf32, #tpu.memory_space<vmem>>) attributes {dimension_semantics = [#tpu.dimension_semantics<arbitrary>], iteration_bounds = array<i64: 2>, scalar_prefetch = 0 : i64, scratch_operands = 1 : i64, tpu.core_type = #tpu.core_type<tc>, window_params = [{pipeline_mode = #tpu.pipeline_mode<synchronous>, transform_indices = @transform_0, window_bounds = array<i64: 8, 32>}, {transform_indices = @transform_1, window_bounds = array<i64: 128, 32>}, {pipeline_mode = #tpu.pipeline_mode<synchronous>, transform_indices = @transform_2, window_bounds = array<i64: 1, 1>}]} {
    %c0_i32 = arith.constant 0 : i32
    %0 = arith.cmpi eq, %arg0, %c0_i32 : i32
    %1 = arith.extui %0 : i1 to i32
    %c0_i32_0 = arith.constant 0 : i32
    %2 = arith.cmpi ne, %1, %c0_i32_0 : i32
    scf.if %2 {
      %cst_15 = arith.constant 0.000000e+00 : f32
      %33 = vector.broadcast %cst_15 : f32 to vector<8x1xf32>
      %c0_16 = arith.constant 0 : index
      %c0_17 = arith.constant 0 : index
      %34 = vector.load %arg4[%c0_16, %c0_17] : memref<8x1xf32, #tpu.memory_space<vmem>>, vector<8x1xf32>
      tpu.vector_store %arg4[%c0_16, %c0_17], %33 {strides = array<i32>} : memref<8x1xf32, #tpu.memory_space<vmem>>, vector<8x1xf32>,
    } else {
    }
    %c0 = arith.constant 0 : index
    %c0_1 = arith.constant 0 : index
    %3 = vector.load %arg1[%c0, %c0_1] : memref<8x32xf32, #tpu.memory_space<vmem>>, vector<8x32xf32>
    %c0_2 = arith.constant 0 : index
    %c0_3 = arith.constant 0 : index
    %4 = vector.load %arg2[%c0_2, %c0_3] : memref<128x32xf32, #tpu.memory_space<vmem>>, vector<128x32xf32>
    %5 = arith.mulf %3, %3 : vector<8x32xf32>
    %cst = arith.constant dense<0.000000e+00> : vector<8xf32>
    %6 = vector.multi_reduction <add>, %5, %cst [1] : vector<8x32xf32> to vector<8xf32>
    %7 = vector.shape_cast %6 : vector<8xf32> to vector<8x1xf32>
    %8 = arith.mulf %4, %4 : vector<128x32xf32>
    %cst_4 = arith.constant dense<0.000000e+00> : vector<128xf32>
    %9 = vector.multi_reduction <add>, %8, %cst_4 [1] : vector<128x32xf32> to vector<128xf32>
    %10 = vector.shape_cast %9 : vector<128xf32> to vector<128x1xf32>
    %11 = tpu.transpose %4, [1, 0] : vector<128x32xf32> -> vector<32x128xf32>
    %cst_5 = arith.constant dense<0.000000e+00> : vector<8x128xf32>
    %12 = tpu.matmul %3, %11, %cst_5 {dimension_numbers = #tpu.dot_dimension_numbers<[1], [0], [0], [1], [0, 0, 1, 1], [], []>} : vector<8x32xf32>, vector<32x128xf32>, vector<8x128xf32> -> vector<8x128xf32>
    %13 = tpu.transpose %10, [1, 0] : vector<128x1xf32> -> vector<1x128xf32>
    %14 = vector.broadcast %7 : vector<8x1xf32> to vector<8x128xf32>
    %15 = vector.broadcast %13 : vector<1x128xf32> to vector<8x128xf32>
    %16 = arith.addf %14, %15 : vector<8x128xf32>
    %cst_6 = arith.constant 2.000000e+00 : f32
    %17 = vector.broadcast %cst_6 : f32 to vector<8x128xf32>
    %18 = arith.mulf %17, %12 : vector<8x128xf32>
    %19 = arith.subf %16, %18 : vector<8x128xf32>
    %cst_7 = arith.constant 0.000000e+00 : f32
    %20 = vector.broadcast %cst_7 : f32 to vector<8x128xf32>
    %21 = arith.maximumf %19, %20 : vector<8x128xf32>
    %cst_8 = arith.constant 9.99999996E-13 : f32
    %22 = vector.broadcast %cst_8 : f32 to vector<8x128xf32>
    %23 = arith.addf %21, %22 : vector<8x128xf32>
    %24 = math.sqrt %23 : vector<8x128xf32>
    %c0_9 = arith.constant 0 : index
    %c0_10 = arith.constant 0 : index
    %25 = vector.load %arg4[%c0_9, %c0_10] : memref<8x1xf32, #tpu.memory_space<vmem>>, vector<8x1xf32>
    %cst_11 = arith.constant dense<0.000000e+00> : vector<8xf32>
    %26 = vector.multi_reduction <add>, %24, %cst_11 [1] : vector<8x128xf32> to vector<8xf32>
    %27 = vector.shape_cast %26 : vector<8xf32> to vector<8x1xf32>
    %28 = arith.addf %25, %27 : vector<8x1xf32>
    %c0_12 = arith.constant 0 : index
    %c0_13 = arith.constant 0 : index
    %29 = vector.load %arg4[%c0_12, %c0_13] : memref<8x1xf32, #tpu.memory_space<vmem>>, vector<8x1xf32>
    tpu.vector_store %arg4[%c0_12, %c0_13], %28 {strides = array<i32>} : memref<8x1xf32, #tpu.memory_space<vmem>>, vector<8x1xf32>,
    %c1_i32 = arith.constant 1 : i32
    %30 = arith.cmpi eq, %arg0, %c1_i32 : i32
    %31 = arith.extui %30 : i1 to i32
    %c0_i32_14 = arith.constant 0 : i32
    %32 = arith.cmpi ne, %31, %c0_i32_14 : i32
    scf.if %32 {
      %c0_15 = arith.constant 0 : index
      %c0_16 = arith.constant 0 : index
      %33 = vector.load %arg4[%c0_15, %c0_16] : memref<8x1xf32, #tpu.memory_space<vmem>>, vector<8x1xf32>
      %cst_17 = arith.constant 3.906250e-03 : f32
      %34 = vector.broadcast %cst_17 : f32 to vector<8x1xf32>
      %35 = arith.mulf %33, %34 : vector<8x1xf32>
      %36 = tpu.transpose %35, [1, 0] : vector<8x1xf32> -> vector<1x8xf32>
      %37 = vector.broadcast %35 : vector<8x1xf32> to vector<8x8xf32>
      %38 = vector.broadcast %36 : vector<1x8xf32> to vector<8x8xf32>
      %39 = arith.subf %37, %38 : vector<8x8xf32>
      %40 = arith.mulf %39, %39 : vector<8x8xf32>
      %cst_18 = arith.constant 9.99999996E-13 : f32
      %41 = vector.broadcast %cst_18 : f32 to vector<8x8xf32>
      %42 = arith.addf %40, %41 : vector<8x8xf32>
      %43 = math.sqrt %42 : vector<8x8xf32>
      %44 = vector.shape_cast %43 : vector<8x8xf32> to vector<1x8x8xf32>
      %cst_19 = arith.constant dense<0.000000e+00> : vector<1xf32>
      %45 = vector.multi_reduction <add>, %44, %cst_19 [1, 2] : vector<1x8x8xf32> to vector<1xf32>
      %46 = vector.shape_cast %45 : vector<1xf32> to vector<1x1x1xf32>
      %47 = vector.extract %46[0, 0, 0] : f32 from vector<1x1x1xf32>
      %48 = vector.broadcast %47 : f32 to vector<1x1xf32>
      %c0_20 = arith.constant 0 : index
      %c0_21 = arith.constant 0 : index
      %49 = vector.load %arg3[%c0_20, %c0_21] : memref<1x1xf32, #tpu.memory_space<vmem>>, vector<1x1xf32>
      tpu.vector_store %arg3[%c0_20, %c0_21], %48 {strides = array<i32>} : memref<1x1xf32, #tpu.memory_space<vmem>>, vector<1x1xf32>,
    } else {
    }
    return
  }
  func.func @transform_0(%arg0: i32) -> (i32, i32) {
    %c0_i32 = arith.constant 0 : i32
    %c0_i32_0 = arith.constant 0 : i32
    %c0_i32_1 = arith.constant 0 : i32
    return %c0_i32, %c0_i32_0 : i32, i32
  }
  func.func @transform_1(%arg0: i32) -> (i32, i32) {
    %c0_i32 = arith.constant 0 : i32
    %c0_i32_0 = arith.constant 0 : i32
    return %arg0, %c0_i32 : i32, i32
  }
  func.func @transform_2(%arg0: i32) -> (i32, i32) {
    %c0_i32 = arith.constant 0 : i32
    %c0_i32_0 = arith.constant 0 : i32
    %c0_i32_1 = arith.constant 0 : i32
    return %c0_i32, %c0_i32_0 : i32, i32
  }
}

</mosaic_0001>

<llo_original>
// kernel: dist_regularize_loss.1
$region0: #{dist_regularize_loss.1}
  #allocation0 [shape = 'u32[]', space=smem, size = 0x4, offset = 0x4, fixed_abs, tag = 'smem constant byte address 0x4 - core index']
  #allocation1 [shape = 'u32[144,128]{1,0:T(1,128)}', space=vmem, size = 0x12000, scoped, tag = 'internal scratch']
  #allocation2 [shape = 'f32[8,1]{1,0:T(8,128)}', space=vmem, size = 0x1000, scoped, tag = 'scratch operand']
  %s0 = inlined_call_operand.vmem [shape: f32[8,32], index: 0, kind: input, shape index: {}]
  %s1 = inlined_call_operand.vmem [shape: f32[256,32], index: 1, kind: input, shape index: {}]
  %s2 = inlined_call_operand.hbm [shape: f32[1,1], index: 2, kind: output, shape index: {}]
  %s3 = sld [smem:[#allocation0]]
  $region49: #{dist_regularize_loss.1} parent=0
    _
  %s5 = ssub.s32 1, %s3
  %s6 = scalar_select 0, %s5, %s3
  $region1: #{dist_regularize_loss.1} parent=0
    #allocation3 [shape = 'u8[512]{0}', space=vmem, size = 0x400, scoped, tag = 'output window, operand 0, single buffered']
    #allocation4 [shape = 's32[2]{0}', space=sflag, size = 0x8, scoped, tag = 'scoped memory for dist_regularize_loss.1']
    %7 = vsyncpa [#allocation4], 0
    loop: start=0, step=1, limit=4
    $region2: #{dist_regularize_loss.1} parent=1 // loop_pre_header
      _
    $region3: #{dist_regularize_loss.1} parent=1 // loop_header
      %s9 = sphi 0, %s13
      %p10 = scmp.ge.s32.totalorder %s9, 4
      %s17 = sphi 0, %s17
      %s19 = sphi 0, %s17
      %s20 = sphi 0, %s19
      %s34 = sphi 0, %s20
      %s40 = sphi 0, %s42
      %s43 = sphi 0, %s40
      %s44 = sphi 0, %s43
      %s60 = sphi 0, %s44
      %s64 = sphi 0, %s64
      %s66 = sphi 0, %s64
      %s67 = sphi 0, %s66
      %s81 = sphi 0, %s67
    $region4: #{dist_regularize_loss.1} parent=1 // loop_header_branch
      %12 = sbr.rel (%p10) target = $region8
    $region5: #{dist_regularize_loss.1} parent=1 // loop_body
      %s14 = ssub.s32 %s9, 1
      %s15 = ssub.s32 %s9, 2
      %s16 = sadd.s32 %s9, 1
      %s18 = sadd.s32 %s17, 1
      %p21 = scmp.eq.s32.totalorder %s9, 1
      %p22 = scmp.ne.s32.totalorder %s17, %s19
      %p23 = scmp.eq.s32.totalorder %s9, 0
      %p24 = por %p22, %p23
      %p25 = scmp.ne.s32.totalorder %s17, %s19
      %p26 = scmp.eq.s32.totalorder %s14, 1
      %p27 = por %p25, %p26
      %p28 = scmp.ne.s32.totalorder %s19, %s20
      %p29 = scmp.eq.s32.totalorder %s14, 0
      %p30 = por %p28, %p29
      %p31 = scmp.ne.s32.totalorder %s19, %s20
      %p32 = scmp.eq.s32.totalorder %s15, 1
      %p33 = por %p31, %p32
      %p35 = scmp.ne.s32.totalorder %s20, %s34
      %p36 = scmp.eq.s32.totalorder %s15, 0
      %p37 = por %p35, %p36
      %s38 = ssub.s32 %s9, %s16
      %p39 = scmp.eq.s32.totalorder %s38, 0
      %s41 = sadd.s32 %s40, 1
      %s42 = scalar_select %p39, %s40, %s41
      %p45 = pneg %p39
      %p46 = scmp.eq.s32.totalorder %s9, 1
      %p47 = por %p45, %p46
      %p48 = scmp.ne.s32.totalorder %s40, %s43
      %p49 = scmp.eq.s32.totalorder %s9, 0
      %p50 = por %p48, %p49
      %p51 = scmp.ne.s32.totalorder %s40, %s43
      %p52 = scmp.eq.s32.totalorder %s14, 1
      %p53 = por %p51, %p52
      %p54 = scmp.ne.s32.totalorder %s43, %s44
      %p55 = scmp.eq.s32.totalorder %s14, 0
      %p56 = por %p54, %p55
      %p57 = scmp.ne.s32.totalorder %s43, %s44
      %p58 = scmp.eq.s32.totalorder %s15, 1
      %p59 = por %p57, %p58
      %p61 = scmp.ne.s32.totalorder %s44, %s60
      %p62 = scmp.eq.s32.totalorder %s15, 0
      %p63 = por %p61, %p62
      %s65 = sadd.s32 %s64, 1
      %p68 = scmp.eq.s32.totalorder %s9, 1
      %p69 = scmp.ne.s32.totalorder %s64, %s66
      %p70 = scmp.eq.s32.totalorder %s9, 0
      %p71 = por %p69, %p70
      %p72 = scmp.ne.s32.totalorder %s64, %s66
      %p73 = scmp.eq.s32.totalorder %s14, 1
      %p74 = por %p72, %p73
      %p75 = scmp.ne.s32.totalorder %s66, %s67
      %p76 = scmp.eq.s32.totalorder %s14, 0
      %p77 = por %p75, %p76
      %p78 = scmp.ne.s32.totalorder %s66, %s67
      %p79 = scmp.eq.s32.totalorder %s15, 1
      %p80 = por %p78, %p79
      %p82 = scmp.ne.s32.totalorder %s67, %s81
      %p83 = scmp.eq.s32.totalorder %s15, 0
      %p84 = por %p82, %p83
      %p85 = scmp.le.s32.totalorder 1, %s9
      %p86 = scmp.lt.s32.totalorder %s9, 3
      %p87 = pnand %p85, %p86
      %p88 = pneg %p87
      // Predicated region
      $region9: #{dist_regularize_loss.1} parent=5 // pred_check
        _
      $region10: #{dist_regularize_loss.1} parent=5 // pred_check_branch
        %90 = sbr.rel (%p87) target = $region12
      $region11: #{dist_regularize_loss.1} parent=5 // pred_region
        %s91 = ssub.s32 %s9, 1
        // Predicated region
        $region13: #{dist_regularize_loss.1} parent=11 // pred_check
          %p92 = pneg %p30
        $region14: #{dist_regularize_loss.1} parent=11 // pred_check_branch
          %94 = sbr.rel (%p92) target = $region16
        $region15: #{dist_regularize_loss.1} parent=11 // pred_region
          _
        $region16: #{dist_regularize_loss.1} parent=11 // pred_fallthru
          _
      $region12: #{dist_regularize_loss.1} parent=5 // pred_fallthru
        _
      %p95 = scmp.lt.s32.totalorder %s9, 2
      // Predicated region
      $region17: #{dist_regularize_loss.1} parent=5 // pred_check
        %p96 = pneg %p95
      $region18: #{dist_regularize_loss.1} parent=5 // pred_check_branch
        %98 = sbr.rel (%p96) target = $region20
      $region19: #{dist_regularize_loss.1} parent=5 // pred_region
        // Predicated region
        $region21: #{dist_regularize_loss.1} parent=19 // pred_check
          %p99 = pneg %p50
        $region22: #{dist_regularize_loss.1} parent=19 // pred_check_branch
          %101 = sbr.rel (%p99) target = $region24
        $region23: #{dist_regularize_loss.1} parent=19 // pred_region
          %s102 = smul.u32 16, %s9
          %p103 = scmp.lt.s32.totalorder %s102, 31
          %s104 = scalar_select %p103, %s102, 31
          %s105 = smul.addr %s104, 8
          %s106 = scalar_lea.vmem %s1, %s105
          %s107 = smul.u32 16, %s9
        $region24: #{dist_regularize_loss.1} parent=19 // pred_fallthru
          _
      $region20: #{dist_regularize_loss.1} parent=5 // pred_fallthru
        _
      %p108 = scmp.le.s32.totalorder 1, %s9
      %p109 = scmp.lt.s32.totalorder %s9, 3
      %p110 = pnand %p108, %p109
      %p111 = pneg %p110
      // Predicated region
      $region25: #{dist_regularize_loss.1} parent=5 // pred_check
        _
      $region26: #{dist_regularize_loss.1} parent=5 // pred_check_branch
        %113 = sbr.rel (%p110) target = $region28
      $region27: #{dist_regularize_loss.1} parent=5 // pred_region
        %s114 = ssub.s32 %s9, 1
        %p115 = pneg %p30
        %p116 = pneg %p27
        %s117 = smul.u32 16, %s14
        %p118 = scmp.lt.s32.totalorder %s117, 31
        %s119 = scalar_select %p118, %s117, 31
        %s120 = smul.addr %s119, 8
        %s121 = scalar_lea.vmem %s1, %s120
        %p122 = pneg %p56
        %p123 = pneg %p53
        %p124 = pneg %p77
        %p125 = pneg %p74
        %s126 = smul.u32 16, %s14
        %p127 = scmp.lt.s32.totalorder %s126, 31
        %s128 = scalar_select %p127, %s126, 31
        %s129 = smul.addr %s128, 8
        %s130 = scalar_lea.vmem %s1, %s129
        %s131 = smul.u32 16, %s14
        %p132 = scmp.eq.s32.totalorder %s14, 0
        // Predicated region
        $region29: #{dist_regularize_loss.1} parent=27 // pred_check
          %p133 = pneg %p132
        $region30: #{dist_regularize_loss.1} parent=27 // pred_check_branch
          %135 = sbr.rel (%p133) target = $region32
        $region31: #{dist_regularize_loss.1} parent=27 // pred_region
          %vm136 = vcmask 7168
          %137 = vst.msk [vmem:[#allocation2] sm:$0xff] %vm136, 0.0
        $region32: #{dist_regularize_loss.1} parent=27 // pred_fallthru
          _
        %v138 = vld [vmem:[%s0] sm:$0xff]
        %v139 = vld [vmem:[%s130] sm:$0xff]
        %v140 = vld [vmem:[%s130 + $0x8] sm:$0xff]
        %v141 = vld [vmem:[%s130 + $0x10] sm:$0xff]
        %v142 = vld [vmem:[%s130 + $0x18] sm:$0xff]
        %v143 = vld [vmem:[%s130 + $0x20] sm:$0xff]
        %v144 = vld [vmem:[%s130 + $0x28] sm:$0xff]
        %v145 = vld [vmem:[%s130 + $0x30] sm:$0xff]
        %v146 = vld [vmem:[%s130 + $0x38] sm:$0xff]
        %v147 = vld [vmem:[%s130 + $0x40] sm:$0xff]
        %v148 = vld [vmem:[%s130 + $0x48] sm:$0xff]
        %v149 = vld [vmem:[%s130 + $0x50] sm:$0xff]
        %v150 = vld [vmem:[%s130 + $0x58] sm:$0xff]
        %v151 = vld [vmem:[%s130 + $0x60] sm:$0xff]
        %v152 = vld [vmem:[%s130 + $0x68] sm:$0xff]
        %v153 = vld [vmem:[%s130 + $0x70] sm:$0xff]
        %v154 = vld [vmem:[%s130 + $0x78] sm:$0xff]
        %v155 = vmul.f32 %v138, %v138
        %vm156 = vcmask 261120
        %v157 = vsel %vm156, %v155, 0.0
        %158 = vadd.xlane.f32.xlu0 %v157
        %v159 = vpop.xlane.xlu0 %158
        %v160 = vmul.f32 %v139, %v139
        %v161 = vmul.f32 %v140, %v140
        %v162 = vmul.f32 %v141, %v141
        %v163 = vmul.f32 %v142, %v142
        %v164 = vmul.f32 %v143, %v143
        %v165 = vmul.f32 %v144, %v144
        %v166 = vmul.f32 %v145, %v145
        %v167 = vmul.f32 %v146, %v146
        %v168 = vmul.f32 %v147, %v147
        %v169 = vmul.f32 %v148, %v148
        %v170 = vmul.f32 %v149, %v149
        %v171 = vmul.f32 %v150, %v150
        %v172 = vmul.f32 %v151, %v151
        %v173 = vmul.f32 %v152, %v152
        %v174 = vmul.f32 %v153, %v153
        %v175 = vmul.f32 %v154, %v154
        %v176 = vsel %vm156, %v160, 0.0
        %177 = vadd.xlane.f32.xlu0 %v176
        %v178 = vpop.xlane.xlu0 %177
        %v179 = vsel %vm156, %v161, 0.0
        %180 = vadd.xlane.f32.xlu0 %v179
        %v181 = vpop.xlane.xlu0 %180
        %v182 = vsel %vm156, %v162, 0.0
        %183 = vadd.xlane.f32.xlu0 %v182
        %v184 = vpop.xlane.xlu0 %183
        %v185 = vsel %vm156, %v163, 0.0
        %186 = vadd.xlane.f32.xlu0 %v185
        %v187 = vpop.xlane.xlu0 %186
        %v188 = vsel %vm156, %v164, 0.0
        %189 = vadd.xlane.f32.xlu0 %v188
        %v190 = vpop.xlane.xlu0 %189
        %v191 = vsel %vm156, %v165, 0.0
        %192 = vadd.xlane.f32.xlu0 %v191
        %v193 = vpop.xlane.xlu0 %192
        %v194 = vsel %vm156, %v166, 0.0
        %195 = vadd.xlane.f32.xlu0 %v194
        %v196 = vpop.xlane.xlu0 %195
        %v197 = vsel %vm156, %v167, 0.0
        %198 = vadd.xlane.f32.xlu0 %v197
        %v199 = vpop.xlane.xlu0 %198
        %v200 = vsel %vm156, %v168, 0.0
        %201 = vadd.xlane.f32.xlu0 %v200
        %v202 = vpop.xlane.xlu0 %201
        %v203 = vsel %vm156, %v169, 0.0
        %204 = vadd.xlane.f32.xlu0 %v203
        %v205 = vpop.xlane.xlu0 %204
        %v206 = vsel %vm156, %v170, 0.0
        %207 = vadd.xlane.f32.xlu0 %v206
        %v208 = vpop.xlane.xlu0 %207
        %v209 = vsel %vm156, %v171, 0.0
        %210 = vadd.xlane.f32.xlu0 %v209
        %v211 = vpop.xlane.xlu0 %210
        %v212 = vsel %vm156, %v172, 0.0
        %213 = vadd.xlane.f32.xlu0 %v212
        %v214 = vpop.xlane.xlu0 %213
        %v215 = vsel %vm156, %v173, 0.0
        %216 = vadd.xlane.f32.xlu0 %v215
        %v217 = vpop.xlane.xlu0 %216
        %v218 = vsel %vm156, %v174, 0.0
        %219 = vadd.xlane.f32.xlu0 %v218
        %v220 = vpop.xlane.xlu0 %219
        %v221 = vsel %vm156, %v175, 0.0
        %222 = vadd.xlane.f32.xlu0 %v221
        %v223 = vpop.xlane.xlu0 %222
        %v225 = vsel %vm156, %v138, 0
        %v228 = vsel %vm156, %v139, 0
        %v231 = vsel %vm156, %v140, 0
        %v234 = vsel %vm156, %v141, 0
        %v237 = vsel %vm156, %v142, 0
        %v240 = vsel %vm156, %v143, 0
        %v243 = vsel %vm156, %v144, 0
        %v246 = vsel %vm156, %v145, 0
        %v249 = vsel %vm156, %v146, 0
        %v252 = vsel %vm156, %v147, 0
        %v255 = vsel %vm156, %v148, 0
        %v258 = vsel %vm156, %v149, 0
        %v261 = vsel %vm156, %v150, 0
        %v264 = vsel %vm156, %v151, 0
        %v267 = vsel %vm156, %v152, 0
        %v270 = vsel %vm156, %v153, 0
        %v273 = vsel %vm156, %v154, 0
        %275 = vmatprep.subr.mxu0 0.0
        %276 = vmatpush1.xpose.msra.mxu0 %v273
        %277 = vmatprep.subr.mxu0 0.0
        %278 = vmatpush1.xpose.msra.mxu0 %v270
        %279 = vmatprep.subr.mxu0 0.0
        %280 = vmatpush1.xpose.msra.mxu0 %v267
        %281 = vmatprep.subr.mxu0 0.0
        %282 = vmatpush1.xpose.msra.mxu0 %v264
        %283 = vmatprep.subr.mxu0 0.0
        %284 = vmatpush1.xpose.msra.mxu0 %v261
        %285 = vmatprep.subr.mxu0 0.0
        %286 = vmatpush1.xpose.msra.mxu0 %v258
        %287 = vmatprep.subr.mxu0 0.0
        %288 = vmatpush1.xpose.msra.mxu0 %v255
        %289 = vmatprep.subr.mxu0 0.0
        %290 = vmatpush1.xpose.msra.mxu0 %v252
        %291 = vmatprep.subr.mxu0 0.0
        %292 = vmatpush1.xpose.msra.mxu0 %v249
        %293 = vmatprep.subr.mxu0 0.0
        %294 = vmatpush1.xpose.msra.mxu0 %v246
        %295 = vmatprep.subr.mxu0 0.0
        %296 = vmatpush1.xpose.msra.mxu0 %v243
        %297 = vmatprep.subr.mxu0 0.0
        %298 = vmatpush1.xpose.msra.mxu0 %v240
        %299 = vmatprep.subr.mxu0 0.0
        %300 = vmatpush1.xpose.msra.mxu0 %v237
        %301 = vmatprep.subr.mxu0 0.0
        %302 = vmatpush1.xpose.msra.mxu0 %v234
        %303 = vmatprep.subr.mxu0 0.0
        %304 = vmatpush1.xpose.msra.mxu0 %v231
        %305 = vmatprep.subr.mxu0 0.0
        %306 = vmatpush1.xpose.msra.mxu0 %v228
        %307 = vmatprep.subr.mxu0 0.0
        %308 = vmatpush2.xpose.msra.mxu0 0.0
        %309 = vmatprep.subr.mxu0 0.0
        %310 = vmatpush2.xpose.msra.mxu0 0.0
        %311 = vmatprep.subr.mxu0 0.0
        %312 = vmatpush2.xpose.msra.mxu0 0.0
        %313 = vmatprep.subr.mxu0 0.0
        %314 = vmatpush2.xpose.msra.mxu0 0.0
        %315 = vmatprep.subr.mxu0 0.0
        %316 = vmatpush2.xpose.msra.mxu0 0.0
        %317 = vmatprep.subr.mxu0 0.0
        %318 = vmatpush2.xpose.msra.mxu0 0.0
        %319 = vmatprep.subr.mxu0 0.0
        %320 = vmatpush2.xpose.msra.mxu0 0.0
        %321 = vmatprep.subr.mxu0 0.0
        %322 = vmatpush2.xpose.msra.mxu0 0.0
        %323 = vmatprep.subr.mxu0 0.0
        %324 = vmatpush2.xpose.msra.mxu0 0.0
        %325 = vmatprep.subr.mxu0 0.0
        %326 = vmatpush2.xpose.msra.mxu0 0.0
        %327 = vmatprep.subr.mxu0 0.0
        %328 = vmatpush2.xpose.msra.mxu0 0.0
        %329 = vmatprep.subr.mxu0 0.0
        %330 = vmatpush2.xpose.msra.mxu0 0.0
        %331 = vmatprep.subr.mxu0 0.0
        %332 = vmatpush2.xpose.msra.mxu0 0.0
        %333 = vmatprep.subr.mxu0 0.0
        %334 = vmatpush2.xpose.msra.mxu0 0.0
        %335 = vmatprep.subr.mxu0 0.0
        %336 = vmatpush2.xpose.msra.mxu0 0.0
        %337 = vmatprep.subr.mxu0 0.0
        %338 = vmatpush2.xpose.msra.mxu0 0.0
        %339 = vmatprep.mubr.f32.mxu0 0.0
        %340 = vmatmul.mubr.f32.gmra.mxu0 %v225
        %v341 = vpop.f32.mrf.mxu0
        %v342 = vadd.f32 0.0, %v341
        %v343 = vpop.f32.mrf.mxu0
        %344 = vdwg.mxu0
        %345 = vxpose.xlu0.b32.start [1/16] %v178, 128
        %346 = vxpose.xlu0.b32.cont [2/16] %v181, 128
        %347 = vxpose.xlu0.b32.cont [3/16] %v184, 128
        %348 = vxpose.xlu0.b32.cont [4/16] %v187, 128
        %349 = vxpose.xlu0.b32.cont [5/16] %v190, 128
        %350 = vxpose.xlu0.b32.cont [6/16] %v193, 128
        %351 = vxpose.xlu0.b32.cont [7/16] %v196, 128
        %352 = vxpose.xlu0.b32.cont [8/16] %v199, 128
        %353 = vxpose.xlu0.b32.cont [9/16] %v202, 128
        %354 = vxpose.xlu0.b32.cont [10/16] %v205, 128
        %355 = vxpose.xlu0.b32.cont [11/16] %v208, 128
        %356 = vxpose.xlu0.b32.cont [12/16] %v211, 128
        %357 = vxpose.xlu0.b32.cont [13/16] %v214, 128
        %358 = vxpose.xlu0.b32.cont [14/16] %v217, 128
        %359 = vxpose.xlu0.b32.cont [15/16] %v220, 128
        %360 = vxpose.xlu0.b32.end [16/16] %v223, 128
        %v361 = vpop.trf.xlu0
        %v362 = vpop.trf.xlu0
        %v363 = vpop.trf.xlu0
        %v364 = vpop.trf.xlu0
        %v365 = vpop.trf.xlu0
        %v366 = vpop.trf.xlu0
        %v367 = vpop.trf.xlu0
        %v368 = vpop.trf.xlu0
        %v369 = vpop.trf.xlu0
        %v370 = vpop.trf.xlu0
        %v371 = vpop.trf.xlu0
        %v372 = vpop.trf.xlu0
        %v373 = vpop.trf.xlu0
        %v374 = vpop.trf.xlu0
        %v375 = vpop.trf.xlu0
        %v376 = vpop.trf.xlu0
        %v377 = vlaneseq
        %v378 = vshrl.u32 %v377, 7
        %v379 = vsub.s32 0, %v378
        %v380 = vrot.slane %v361, %v379
        %v381 = vadd.f32 %v159, %v380
        %v382 = vmul.f32 %v342, 2.0
        %v383 = vsub.f32 %v381, %v382
        %v384 = vmax.f32 %v383, 0.0
        %v385 = vadd.f32 %v384, 1e-12
        %v386 = vrsqrt.pop %v385
        %v387 = vmul.f32 %v385, %v386
        %vm388 = vcmp.eq.f32.partialorder %v385, inf
        %v389 = vsel %vm388, %v385, %v387
        %vm390 = vcmp.eq.f32.partialorder %v385, 0.0
        %v391 = vand.u32 %v385, 2147483648
        %v392 = vsel %vm390, %v391, %v389
        %v393 = vld [vmem:[#allocation2] sm:$0xff]
        %394 = vadd.xlane.f32.xlu0 %v392
        %v395 = vpop.xlane.xlu0 %394
        %v396 = vadd.f32 %v393, %v395
        %vm397 = vcmask 7168
        %398 = vst.msk [vmem:[#allocation2] sm:$0xff] %vm397, %v396
        %p399 = scmp.eq.s32.totalorder %s14, 1
        // Predicated region
        $region33: #{dist_regularize_loss.1} parent=27 // pred_check
          %p400 = pneg %p399
        $region34: #{dist_regularize_loss.1} parent=27 // pred_check_branch
          %402 = sbr.rel (%p400) target = $region36
        $region35: #{dist_regularize_loss.1} parent=27 // pred_region
          %v403 = vld [vmem:[#allocation2] sm:$0xff]
          %v404 = vmul.f32 %v403, 0.00390625
          %405 = vxpose.xlu0.b32.start [1/16] %v404, 128
          %406 = vxpose.xlu0.b32.cont [2/16] 0.0, 128
          %407 = vxpose.xlu0.b32.cont [3/16] 0.0, 128
          %408 = vxpose.xlu0.b32.cont [4/16] 0.0, 128
          %409 = vxpose.xlu0.b32.cont [5/16] 0.0, 128
          %410 = vxpose.xlu0.b32.cont [6/16] 0.0, 128
          %411 = vxpose.xlu0.b32.cont [7/16] 0.0, 128
          %412 = vxpose.xlu0.b32.cont [8/16] 0.0, 128
          %413 = vxpose.xlu0.b32.cont [9/16] 0.0, 128
          %414 = vxpose.xlu0.b32.cont [10/16] 0.0, 128
          %415 = vxpose.xlu0.b32.cont [11/16] 0.0, 128
          %416 = vxpose.xlu0.b32.cont [12/16] 0.0, 128
          %417 = vxpose.xlu0.b32.cont [13/16] 0.0, 128
          %418 = vxpose.xlu0.b32.cont [14/16] 0.0, 128
          %419 = vxpose.xlu0.b32.cont [15/16] 0.0, 128
          %420 = vxpose.xlu0.b32.end [16/16] 0.0, 128
          %v421 = vpop.trf.xlu0
          %v422 = vpop.trf.xlu0
          %v423 = vpop.trf.xlu0
          %v424 = vpop.trf.xlu0
          %v425 = vpop.trf.xlu0
          %v426 = vpop.trf.xlu0
          %v427 = vpop.trf.xlu0
          %v428 = vpop.trf.xlu0
          %v429 = vpop.trf.xlu0
          %v430 = vpop.trf.xlu0
          %v431 = vpop.trf.xlu0
          %v432 = vpop.trf.xlu0
          %v433 = vpop.trf.xlu0
          %v434 = vpop.trf.xlu0
          %v435 = vpop.trf.xlu0
          %v436 = vpop.trf.xlu0
          %438 = vset.pattern.permute.xlu0 0
          %439 = vperm.xlu0 %438, %v404
          %v440 = vpop.permute.xlu0 %439
          %v442 = vlaneseq
          %v443 = vshrl.u32 %v442, 7
          %v444 = vsub.s32 0, %v443
          %v445 = vrot.slane %v421, %v444
          %v446 = vsub.f32 %v440, %v445
          %v447 = vmul.f32 %v446, %v446
          %v448 = vadd.f32 %v447, 1e-12
          %v449 = vrsqrt.pop %v448
          %v450 = vmul.f32 %v448, %v449
          %vm451 = vcmp.eq.f32.partialorder %v448, inf
          %v452 = vsel %vm451, %v448, %v450
          %vm453 = vcmp.eq.f32.partialorder %v448, 0.0
          %v454 = vand.u32 %v448, 2147483648
          %v455 = vsel %vm453, %v454, %v452
          %vm456 = vcmask 64512
          %v457 = vsel %vm456, %v455, 0.0
          %458 = vadd.xlane.f32.xlu0 %v457
          %v459 = vpop.xlane.xlu0 %458
          %v460 = vrot.slane %v459, 4
          %v461 = vadd.f32 %v459, %v460
          %v462 = vrot.slane %v461, 2
          %v463 = vadd.f32 %v461, %v462
          %v464 = vrot.slane %v463, 1
          %v465 = vadd.f32 %v463, %v464
          %s466 = vtos %v465
          %v467 = vstv %s466
          %vm468 = vcmask 0
          %469 = vst.msk [vmem:[#allocation3] sm:$0x1] %vm468, %v467
        $region36: #{dist_regularize_loss.1} parent=27 // pred_fallthru
          _
        // Predicated region
        $region37: #{dist_regularize_loss.1} parent=27 // pred_check
          %p470 = pneg %p74
        $region38: #{dist_regularize_loss.1} parent=27 // pred_check_branch
          %472 = sbr.rel (%p470) target = $region40
        $region39: #{dist_regularize_loss.1} parent=27 // pred_region
          %s474 = ssub.s32 16, 16
          %475 = vsyncadd [#allocation4], %s474
          %s477 = sshll.u32 [#allocation3], 4
          %s478 = int_to_ptr.vmem [resolvable:$true] %s477
          %480 = dma.vmem_to_hbm [thread:$0]  %s478, 16, %s2, [#allocation4]
        $region40: #{dist_regularize_loss.1} parent=27 // pred_fallthru
          _
        // Predicated region
        $region41: #{dist_regularize_loss.1} parent=27 // pred_check
          %p481 = pneg %p74
        $region42: #{dist_regularize_loss.1} parent=27 // pred_check_branch
          %483 = sbr.rel (%p481) target = $region44
        $region43: #{dist_regularize_loss.1} parent=27 // pred_region
          %484 = dma.done [#allocation4], 16
        $region44: #{dist_regularize_loss.1} parent=27 // pred_fallthru
          _
      $region28: #{dist_regularize_loss.1} parent=5 // pred_fallthru
        _
      %p485 = scmp.le.s32.totalorder 2, %s9
      // Predicated region
      $region45: #{dist_regularize_loss.1} parent=5 // pred_check
        %p486 = pneg %p485
      $region46: #{dist_regularize_loss.1} parent=5 // pred_check_branch
        %488 = sbr.rel (%p486) target = $region48
      $region47: #{dist_regularize_loss.1} parent=5 // pred_region
        %s489 = ssub.s32 %s9, 2
      $region48: #{dist_regularize_loss.1} parent=5 // pred_fallthru
        _
    $region6: #{dist_regularize_loss.1} parent=1 // loop_footer
      %s13 = sadd.s32 1, %s9
    $region7: #{dist_regularize_loss.1} parent=1 // loop_footer_branch
      %8 = sbr.rel target = $region3
    $region8: #{dist_regularize_loss.1} parent=1 // loop_exit
      _
    %490 = vsyncpa [#allocation4], 1
    %s491 = scalar_lea.sflag [#allocation4], 1
    %492 = vsyncpa %s491, 1

</llo_original>
